<compile_context>
chip_gen: v7x
topology: tpu7x:2x2x1
jax: 0.10.0
libtpu: 0.0.40
codegen_flags: <defaults>
</compile_context>

<pallas_src>
import jax
import jax.numpy as jnp
from jax.experimental import pallas as pl
from jax.experimental.pallas import tpu as pltpu

_LANES = 128  # vreg lane width; the blocked (last) dim stays a multiple of this.


def _fma_kernel(w_ref, b_ref, x_ref, o_ref):
    # w_ref, b_ref: (1,) f32 scalars in SMEM.
    # x_ref / o_ref: (1, block_elems) lane-dense VMEM tiles in the I/O dtype.
    w = w_ref[0]
    b = b_ref[0]
    x = x_ref[...].astype(jnp.float32)          # no-op for f32 inputs
    o_ref[...] = (x * w + b).astype(o_ref.dtype)


def linear_regression_forward(
    x,
    weight,
    bias,
    *,
    block_elems=256 * 1024,   # ~1 MiB of f32 data per block (double-buffered in+out)
    min_pallas_elems=2048,    # below this, skip the kernel launch entirely
):
    """y = x @ weight.T + bias for weight (1, 1), bias (1,), x (N, 1) -> (N, 1)."""
    n, in_features = x.shape
    assert in_features == 1, "LinearRegression uses nn.Linear(1, 1)"
    out_dtype = x.dtype

    w = weight.reshape(1).astype(jnp.float32)
    b = bias.reshape(1).astype(jnp.float32)

    # Tiny-N fast path: fixed launch + dispatch cost dwarfs the work for a few
    # KB of data; the fused jnp expression is strictly faster there.
    if n < min_pallas_elems:
        y = x.astype(jnp.float32) * w[0] + b[0]
        return y.astype(out_dtype)

    # Lane-dense view of the flat data: (N, 1) -> (1, N).  No padding of the
    # whole array, no slab rounding -- the boundary block is masked by Pallas.
    x2 = x.reshape(1, n)

    # Block size: multiple of 128 lanes, never (much) larger than the array.
    be = ((min(block_elems, n) + _LANES - 1) // _LANES) * _LANES
    be = max(_LANES, be)
    grid = (pl.cdiv(n, be),)

    y2 = pl.pallas_call(
        _fma_kernel,
        out_shape=jax.ShapeDtypeStruct((1, n), out_dtype),
        grid=grid,
        in_specs=[
            pl.BlockSpec(memory_space=pltpu.SMEM),        # weight scalar
            pl.BlockSpec(memory_space=pltpu.SMEM),        # bias scalar
            pl.BlockSpec((1, be), lambda i: (0, i)),      # x lane-chunk
        ],
        out_specs=pl.BlockSpec((1, be), lambda i: (0, i)),
        compiler_params=pltpu.CompilerParams(
            dimension_semantics=("parallel",),
            # Explicit scoped-VMEM limit: keeps bigger blocks compiling on
            # v5e (16 MiB default) while staying <= physical VMEM on v7x.
            vmem_limit_bytes=64 * 1024 * 1024,
        ),
    )(w, b, x2)

    # (1, N) -> (N, 1): metadata/layout change only, no pad or slice of data.
    return y2.reshape(n, 1)


if __name__ == "__main__":
    # Deterministic parameter init mirroring nn.Linear(1, 1):
    # U(-1/sqrt(in_features), 1/sqrt(in_features)) with in_features = 1.
    key = jax.random.PRNGKey(0)
    kw, kb = jax.random.split(key)
    weight = jax.random.uniform(kw, (1, 1), jnp.float32, minval=-1.0, maxval=1.0)
    bias = jax.random.uniform(kb, (1,), jnp.float32, minval=-1.0, maxval=1.0)

    # The module's exact input: 21 points in [-1, 1], shape (21, 1).
    x = jnp.arange(-1.0, 1.0001, 0.1, dtype=jnp.float32).reshape(-1, 1)
    y_ref_small = x @ weight.T + bias

    # 1) Default path for tiny N: fused jnp fast path (no kernel launch).
    y_fast = linear_regression_forward(x, weight, bias)
    jax.block_until_ready(y_fast)
    assert y_fast.shape == (21, 1)
    assert jnp.allclose(y_fast, y_ref_small, atol=1e-6), "fast path mismatch (N=21)"

    # 2) Force the Pallas kernel on the same 21-point input (single masked block).
    y_kernel = linear_regression_forward(x, weight, bias, min_pallas_elems=0)
    jax.block_until_ready(y_kernel)
    assert y_kernel.shape == (21, 1)
    assert jnp.allclose(y_kernel, y_ref_small, atol=1e-6), "kernel mismatch (N=21)"

    # 3) Multi-block grid with a masked final block (3000 = 2*1024 + 952).
    x_big = jax.random.normal(jax.random.PRNGKey(1), (3000, 1), jnp.float32)
    y_big_ref = x_big @ weight.T + bias
    y_big = linear_regression_forward(
        x_big, weight, bias, block_elems=1024, min_pallas_elems=0
    )
    jax.block_until_ready(y_big)
    assert y_big.shape == (3000, 1)
    assert jnp.allclose(y_big, y_big_ref, atol=1e-5), "kernel mismatch (N=3000, tiled)"

    # 4) Default block size path (single partially-masked block).
    y_big2 = linear_regression_forward(x_big, weight, bias, min_pallas_elems=0)
    jax.block_until_ready(y_big2)
    assert jnp.allclose(y_big2, y_big_ref, atol=1e-5), "kernel mismatch (N=3000, default)"

    print("KERNEL_OK")
</pallas_src>

<mosaic_0001>
module attributes {stable_mosaic.version = 11 : i64} {
  func.func @_fma_kernel(%arg0: i32, %arg1: memref<1xf32, #tpu.memory_space<smem>>, %arg2: memref<1xf32, #tpu.memory_space<smem>>, %arg3: memref<1x128xf32, #tpu.memory_space<vmem>>, %arg4: memref<1x128xf32, #tpu.memory_space<vmem>>) attributes {dimension_semantics = [#tpu.dimension_semantics<parallel>], iteration_bounds = array<i64: 1>, scalar_prefetch = 0 : i64, scratch_operands = 0 : i64, tpu.core_type = #tpu.core_type<tc>, window_params = [{transform_indices = @transform_0, window_bounds = array<i64: 1>}, {transform_indices = @transform_1, window_bounds = array<i64: 1>}, {transform_indices = @transform_2, window_bounds = array<i64: 1, 128>}, {transform_indices = @transform_3, window_bounds = array<i64: 1, 128>}]} {
    %c0 = arith.constant 0 : index
    %0 = memref.load %arg1[%c0] : memref<1xf32, #tpu.memory_space<smem>>
    %c0_0 = arith.constant 0 : index
    %1 = memref.load %arg2[%c0_0] : memref<1xf32, #tpu.memory_space<smem>>
    %c0_1 = arith.constant 0 : index
    %c0_2 = arith.constant 0 : index
    %2 = vector.load %arg3[%c0_1, %c0_2] : memref<1x128xf32, #tpu.memory_space<vmem>>, vector<1x128xf32>
    %3 = vector.broadcast %0 : f32 to vector<1x128xf32>
    %4 = arith.mulf %2, %3 : vector<1x128xf32>
    %5 = vector.broadcast %1 : f32 to vector<1x128xf32>
    %6 = arith.addf %4, %5 : vector<1x128xf32>
    %c0_3 = arith.constant 0 : index
    %c0_4 = arith.constant 0 : index
    %7 = vector.load %arg4[%c0_3, %c0_4] : memref<1x128xf32, #tpu.memory_space<vmem>>, vector<1x128xf32>
    tpu.vector_store %arg4[%c0_3, %c0_4], %6 {strides = array<i32>} : memref<1x128xf32, #tpu.memory_space<vmem>>, vector<1x128xf32>,
    return
  }
  func.func @transform_0(%arg0: i32) -> i32 {
    %c0_i32 = arith.constant 0 : i32
    %c0_i32_0 = arith.constant 0 : i32
    return %c0_i32 : i32
  }
  func.func @transform_1(%arg0: i32) -> i32 {
    %c0_i32 = arith.constant 0 : i32
    %c0_i32_0 = arith.constant 0 : i32
    return %c0_i32 : i32
  }
  func.func @transform_2(%arg0: i32) -> (i32, i32) {
    %c0_i32 = arith.constant 0 : i32
    %c0_i32_0 = arith.constant 0 : i32
    return %c0_i32, %arg0 : i32, i32
  }
  func.func @transform_3(%arg0: i32) -> (i32, i32) {
    %c0_i32 = arith.constant 0 : i32
    %c0_i32_0 = arith.constant 0 : i32
    return %c0_i32, %arg0 : i32, i32
  }
}

</mosaic_0001>

<llo_original>
// kernel: tpu_custom_call.1
$region0: #{tpu_custom_call.1}
  #allocation0 [shape = 'u32[]', space=smem, size = 0x4, offset = 0x4, fixed_abs, tag = 'smem constant byte address 0x4 - core index']
  #allocation1 [shape = 'u32[144,128]{1,0:T(1,128)}', space=vmem, size = 0x12000, scoped, tag = 'internal scratch']
  #allocation2 [shape = 'f32[1]{0:T(128)S(6)}', space=smem, size = 0x200, scoped, tag = 'scoped memory for tpu_custom_call.1']
  #allocation3 [shape = 'f32[1]{0:T(128)S(6)}', space=smem, size = 0x200, scoped, tag = 'scoped memory for tpu_custom_call.1']
  %s0 = inlined_call_operand.<no memory space> [shape: f32[1], index: 0, kind: input, shape index: {}]
  %s1 = inlined_call_operand.<no memory space> [shape: f32[1], index: 1, kind: input, shape index: {}]
  %s2 = inlined_call_operand.hbm [shape: f32[1,21], index: 2, kind: input, shape index: {}]
  %s3 = inlined_call_operand.hbm [shape: f32[1,21], index: 3, kind: output, shape index: {}]
  %s4 = sld [smem:[#allocation0]]
  $region26: #{tpu_custom_call.1} parent=0
    _
  %s6 = ssub.s32 1, %s4
  %s7 = scalar_select 0, %s6, %s4
  %8 = sst [smem:[#allocation2]] %s0
  %9 = sst [smem:[#allocation3]] %s1
  $region1: #{tpu_custom_call.1} parent=0
    #allocation4 [shape = 'u8[512]{0}', space=vmem, size = 0x400, scoped, tag = 'input window, operand 2, single buffered']
    #allocation5 [shape = 's32[1]{0}', space=sflag, size = 0x4, scoped, tag = 'scoped memory for tpu_custom_call.1']
    #allocation6 [shape = 's32[1]{0}', space=sflag, size = 0x4, scoped, tag = 'scoped memory for tpu_custom_call.1']
    #allocation7 [shape = 'u8[512]{0}', space=vmem, size = 0x400, scoped, tag = 'output window, operand 0, single buffered']
    %10 = vsyncpa [#allocation5], 0
    %11 = vsyncpa [#allocation6], 0
    // Predicated region
    $region2: #{tpu_custom_call.1} parent=1 // pred_check
      _
    $region3: #{tpu_custom_call.1} parent=1 // pred_check_branch
      %13 = sbr.rel (0) target = $region5
    $region4: #{tpu_custom_call.1} parent=1 // pred_region
      _
    $region5: #{tpu_custom_call.1} parent=1 // pred_fallthru
      _
    // Predicated region
    $region6: #{tpu_custom_call.1} parent=1 // pred_check
      _
    $region7: #{tpu_custom_call.1} parent=1 // pred_check_branch
      %15 = sbr.rel (0) target = $region9
    $region8: #{tpu_custom_call.1} parent=1 // pred_region
      _
    $region9: #{tpu_custom_call.1} parent=1 // pred_fallthru
      _
    // Predicated region
    $region10: #{tpu_custom_call.1} parent=1 // pred_check
      _
    $region11: #{tpu_custom_call.1} parent=1 // pred_check_branch
      %17 = sbr.rel (0) target = $region13
    $region12: #{tpu_custom_call.1} parent=1 // pred_region
      %s19 = ssub.s32 16, 16
      %20 = vsyncadd [#allocation5], %s19
      %s22 = sshll.u32 [#allocation4], 4
      %s23 = int_to_ptr.vmem [resolvable:$true] %s22
      %25 = dma.hbm_to_vmem [thread:$0]  %s2, 16, %s23, [#allocation5]
    $region13: #{tpu_custom_call.1} parent=1 // pred_fallthru
      _
    // Predicated region
    $region14: #{tpu_custom_call.1} parent=1 // pred_check
      _
    $region15: #{tpu_custom_call.1} parent=1 // pred_check_branch
      %27 = sbr.rel (0) target = $region17
    $region16: #{tpu_custom_call.1} parent=1 // pred_region
      %28 = dma.done [#allocation5], 16
    $region17: #{tpu_custom_call.1} parent=1 // pred_fallthru
      _
    %s29 = sld [smem:[#allocation2]]
    %s30 = sld [smem:[#allocation3]]
    %v31 = vld [vmem:[#allocation4] sm:$0x1]
    %v32 = vstv %s29
    %v33 = vmul.f32 %v31, %v32
    %v34 = vstv %s30
    %v35 = vadd.f32 %v33, %v34
    %36 = vst [vmem:[#allocation7] sm:$0x1] %v35
    // Predicated region
    $region18: #{tpu_custom_call.1} parent=1 // pred_check
      _
    $region19: #{tpu_custom_call.1} parent=1 // pred_check_branch
      %38 = sbr.rel (0) target = $region21
    $region20: #{tpu_custom_call.1} parent=1 // pred_region
      %s40 = ssub.s32 16, 16
      %41 = vsyncadd [#allocation6], %s40
      %s43 = sshll.u32 [#allocation7], 4
      %s44 = int_to_ptr.vmem [resolvable:$true] %s43
      %46 = dma.vmem_to_hbm [thread:$0]  %s44, 16, %s3, [#allocation6]
    $region21: #{tpu_custom_call.1} parent=1 // pred_fallthru
      _
    // Predicated region
    $region22: #{tpu_custom_call.1} parent=1 // pred_check
      _
    $region23: #{tpu_custom_call.1} parent=1 // pred_check_branch
      %48 = sbr.rel (0) target = $region25
    $region24: #{tpu_custom_call.1} parent=1 // pred_region
      %49 = dma.done [#allocation6], 16
    $region25: #{tpu_custom_call.1} parent=1 // pred_fallthru
      _
    %50 = vsyncpa [#allocation5], 1
    %51 = vsyncpa [#allocation6], 1

</llo_original>
